<compile_context>
chip_gen: v7x
topology: tpu7x:2x2x1
jax: 0.10.0
libtpu: 0.0.40
codegen_flags: <defaults>
</compile_context>

<pallas_src>
import jax
import jax.numpy as jnp
from jax.experimental import pallas as pl
from jax.experimental.pallas import tpu as pltpu


def _round_up(a: int, b: int) -> int:
    return (a + b - 1) // b * b


def _sublane(dtype) -> int:
    return {4: 8, 2: 16, 1: 32}.get(jnp.dtype(dtype).itemsize, 8)


def _vmem_capacity_bytes() -> int:
    try:
        return int(pltpu.get_tpu_info().vmem_capacity_bytes)
    except Exception:
        return 64 * 1024 * 1024            # conservative (v7x per-TC VMEM)


_BUFFERED_OK = None


def _buffered_supported() -> bool:
    """One-time eager feature-detect for pl.Buffered pipeline_mode."""
    global _BUFFERED_OK
    if _BUFFERED_OK is not None:
        return _BUFFERED_OK
    try:
        def _k(x_ref, o_ref):
            o_ref[...] = x_ref[...]

        x = jnp.zeros((8, 128), jnp.float32)
        out = pl.pallas_call(
            _k,
            out_shape=jax.ShapeDtypeStruct((16, 128), jnp.float32),
            grid=(2,),
            in_specs=[pl.BlockSpec((8, 128), lambda i: (0, 0),
                                   pipeline_mode=pl.Buffered(1))],
            out_specs=pl.BlockSpec((8, 128), lambda i: (i, 0)),
        )(x)
        jax.block_until_ready(out)
        _BUFFERED_OK = True
    except Exception:
        _BUFFERED_OK = False
    return _BUFFERED_OK


def _default_act_dtype(wdtype):
    # bf16 VPU/EUP exists on v6e/v7x; v5e keeps the f32 activation path.
    if jnp.dtype(wdtype) != jnp.bfloat16:
        return jnp.float32
    try:
        kind = jax.devices()[0].device_kind.lower()
    except Exception:
        kind = ""
    return jnp.float32 if "v5" in kind else jnp.bfloat16


def prepare_residual_mlp_params(w1, b1, w2, b2, *, mxu_dtype=jnp.bfloat16):
    """Pad weights/biases to lane-dense (multiple-of-128) shapes and cast the
    matmul operands to the MXU dtype ONCE (hoisted out of the per-call path)."""
    D, H = w1.shape
    Dp, Hp = _round_up(D, 128), _round_up(H, 128)
    wdtype = jnp.dtype(mxu_dtype)

    def padded(a, shape):
        pads = tuple((0, s - d) for d, s in zip(a.shape, shape))
        return a if all(p == (0, 0) for p in pads) else jnp.pad(a, pads)

    return dict(
        w1=padded(w1, (Dp, Hp)).astype(wdtype),
        w2=padded(w2, (Hp, Dp)).astype(wdtype),
        b1=padded(b1.reshape(1, H), (1, Hp)),
        b2=padded(b2.reshape(1, D), (1, Dp)),
        D=D, H=H, Dp=Dp, Hp=Hp, wdtype=wdtype,
    )


def _make_kernel(act_dtype):
    def kernel(x_ref, w1_ref, b1_ref, w2_ref, b2_ref, o_ref):
        # Residual(fnc): fnc(x) + x with fnc = Linear -> GELU -> Linear.
        x = x_ref[...]                                          # (tm, Dp)
        h = jnp.dot(x.astype(w1_ref.dtype), w1_ref[...],
                    preferred_element_type=jnp.float32)         # MXU, f32 acc
        h = h + b1_ref[...].astype(jnp.float32)
        h = jax.nn.gelu(h.astype(act_dtype))                    # EUP/VPU
        y = jnp.dot(h.astype(w2_ref.dtype), w2_ref[...],
                    preferred_element_type=jnp.float32)         # MXU, f32 acc
        y = y + b2_ref[...].astype(jnp.float32)
        # Residual add in f32, single cast to the output dtype.
        o_ref[...] = (y + x.astype(jnp.float32)).astype(o_ref.dtype)
    return kernel


def residual_mlp(x, params, *, tm=None):
    N, D = x.shape
    assert D == params["D"], "feature dim mismatch with prepared params"
    Dp, Hp, H = params["Dp"], params["Hp"], params["H"]
    wdtype = params["wdtype"]
    out_dtype = x.dtype
    xbytes = jnp.dtype(x.dtype).itemsize
    wbytes = jnp.dtype(wdtype).itemsize
    obytes = jnp.dtype(out_dtype).itemsize

    # ---- row tile: aligned to sublane packing, capped so grid has >= ~8 steps.
    sub = max(_sublane(x.dtype), _sublane(wdtype))
    if tm is None:
        tm = 512 if wbytes <= 2 else 256
    tm_cap = _round_up(pl.cdiv(N, 8), sub)
    tm = max(sub, min(_round_up(tm, sub), tm_cap))

    buffered_ok = _buffered_supported()
    w_bufs = 1 if buffered_ok else 2
    vmem_cap = _vmem_capacity_bytes()
    budget = int(0.7 * vmem_cap)
    x_bufs = 3 if (buffered_ok and pl.cdiv(N, tm) >= 4) else 2

    def footprint(tm_):
        weights = w_bufs * 2 * Dp * Hp * wbytes            # W1 + W2
        biases = w_bufs * (Hp + Dp) * 4
        x_tiles = x_bufs * tm_ * Dp * xbytes
        o_tiles = 2 * tm_ * Dp * obytes
        interm = tm_ * Hp * 4 + 2 * tm_ * Dp * 4           # f32 intermediates
        return weights + biases + x_tiles + o_tiles + interm

    while footprint(tm) > budget and tm > sub:
        tm = max(sub, (tm // 2) // sub * sub)

    grid = (pl.cdiv(N, tm),)

    # Only the lane (feature) dim may need padding; rows are NOT padded.
    # The ragged last row-tile computes on whatever rows the DMA brings in,
    # which is benign because rows are fully independent and only the valid
    # rows are written back.
    # TODO(synk): if a cross-row reduction is ever added, mask the last tile.
    xp = x if Dp == D else jnp.pad(x, ((0, 0), (0, Dp - D)))

    kernel = _make_kernel(_default_act_dtype(wdtype))

    def spec(shape, index_map, bufs=None):
        if bufs is None or not buffered_ok:
            return pl.BlockSpec(shape, index_map)
        return pl.BlockSpec(shape, index_map, pipeline_mode=pl.Buffered(bufs))

    cost = pl.CostEstimate(
        flops=4 * N * D * H,
        transcendentals=N * H,
        bytes_accessed=N * Dp * (xbytes + obytes) + 2 * Dp * Hp * wbytes
                       + (Hp + Dp) * 4,
    )
    vmem_limit = int(min(max(32 * 1024 * 1024, 2 * footprint(tm)),
                         vmem_cap - 8 * 1024 * 1024))

    out_p = pl.pallas_call(
        kernel,
        out_shape=jax.ShapeDtypeStruct((N, Dp), out_dtype),
        grid_spec=pltpu.PrefetchScalarGridSpec(
            num_scalar_prefetch=0,
            grid=grid,
            in_specs=[
                spec((tm, Dp), lambda i: (i, 0),
                     bufs=(3 if x_bufs == 3 else None)),       # x row tile (streamed)
                spec((Dp, Hp), lambda i: (0, 0), bufs=1),      # W1 (resident)
                spec((1, Hp), lambda i: (0, 0), bufs=1),       # b1
                spec((Hp, Dp), lambda i: (0, 0), bufs=1),      # W2 (resident)
                spec((1, Dp), lambda i: (0, 0), bufs=1),       # b2
            ],
            out_specs=pl.BlockSpec((tm, Dp), lambda i: (i, 0)),
        ),
        compiler_params=pltpu.CompilerParams(
            dimension_semantics=("parallel",),
            vmem_limit_bytes=vmem_limit,
        ),
        cost_estimate=cost,
    )(xp, params["w1"], params["b1"], params["w2"], params["b2"])

    return out_p if Dp == D else out_p[:, :D]


def residual_mlp_ref(x, w1, b1, w2, b2):
    h = jax.nn.gelu(x @ w1 + b1.reshape(1, -1))
    return (h @ w2 + b2.reshape(1, -1)) + x


if __name__ == "__main__":
    key = jax.random.PRNGKey(0)

    # ---- test 1: small shapes implied by the module (nodes=8, hidden=32, mlp hidden=64), f32.
    N, D, H = 8, 32, 64
    kx, k1, k2, k3, k4, k5 = jax.random.split(key, 6)
    x = jax.random.normal(kx, (N, D), dtype=jnp.float32)
    w1 = jax.random.normal(k1, (D, H), dtype=jnp.float32) * 0.1
    b1 = jax.random.normal(k2, (1, H), dtype=jnp.float32) * 0.1
    w2 = jax.random.normal(k3, (H, D), dtype=jnp.float32) * 0.1
    b2 = jax.random.normal(k4, (1, D), dtype=jnp.float32) * 0.1
    ref = residual_mlp_ref(x, w1, b1, w2, b2)

    # Default path: bf16 MXU operands (fast on all generations), f32 accumulation.
    params_bf16 = prepare_residual_mlp_params(w1, b1, w2, b2)
    out = jax.block_until_ready(residual_mlp(x, params_bf16))
    assert out.shape == (N, D)
    assert jnp.allclose(out, ref, atol=5e-2, rtol=5e-2), "bf16-MXU mismatch vs reference"

    # Opt-in f32 MXU operands: tight-tolerance check.
    params_f32 = prepare_residual_mlp_params(w1, b1, w2, b2, mxu_dtype=jnp.float32)
    out_f32 = jax.block_until_ready(residual_mlp(x, params_f32))
    assert jnp.allclose(out_f32, ref, atol=1e-5, rtol=1e-5), "f32 mismatch vs reference"

    # ---- test 2: larger bf16 run exercising multi-step grid (>=8 steps) and a
    # ragged last row tile (N not a multiple of tm).
    N2, D2, H2 = 1000, 256, 512
    kx2, k6, k7, k8, k9 = jax.random.split(k5, 5)
    x2 = jax.random.normal(kx2, (N2, D2), dtype=jnp.float32).astype(jnp.bfloat16)
    w1b = (jax.random.normal(k6, (D2, H2), dtype=jnp.float32) * 0.05).astype(jnp.bfloat16)
    b1b = (jax.random.normal(k7, (1, H2), dtype=jnp.float32) * 0.05).astype(jnp.bfloat16)
    w2b = (jax.random.normal(k8, (H2, D2), dtype=jnp.float32) * 0.05).astype(jnp.bfloat16)
    b2b = (jax.random.normal(k9, (1, D2), dtype=jnp.float32) * 0.05).astype(jnp.bfloat16)

    params2 = prepare_residual_mlp_params(w1b, b1b, w2b, b2b)   # prepared once
    out2 = jax.block_until_ready(residual_mlp(x2, params2))
    ref2 = residual_mlp_ref(x2.astype(jnp.float32), w1b.astype(jnp.float32),
                            b1b.astype(jnp.float32), w2b.astype(jnp.float32),
                            b2b.astype(jnp.float32))
    assert out2.shape == (N2, D2)
    assert jnp.allclose(out2.astype(jnp.float32), ref2, atol=5e-2, rtol=5e-2), \
        "bf16 mismatch vs JAX reference"

    print("KERNEL_OK")
</pallas_src>

<mosaic_0001>
module attributes {stable_mosaic.version = 11 : i64} {
  func.func @_k(%arg0: i32, %arg1: memref<8x128xf32, #tpu.memory_space<vmem>>, %arg2: memref<8x128xf32, #tpu.memory_space<vmem>>) attributes {dimension_semantics = [#tpu.dimension_semantics<arbitrary>], iteration_bounds = array<i64: 2>, scalar_prefetch = 0 : i64, scratch_operands = 0 : i64, tpu.core_type = #tpu.core_type<tc>, window_params = [{pipeline_mode = #tpu.pipeline_mode<synchronous>, transform_indices = @transform_0, window_bounds = array<i64: 8, 128>}, {transform_indices = @transform_1, window_bounds = array<i64: 8, 128>}]} {
    %c0 = arith.constant 0 : index
    %c0_0 = arith.constant 0 : index
    %0 = vector.load %arg1[%c0, %c0_0] : memref<8x128xf32, #tpu.memory_space<vmem>>, vector<8x128xf32>
    %c0_1 = arith.constant 0 : index
    %c0_2 = arith.constant 0 : index
    %1 = vector.load %arg2[%c0_1, %c0_2] : memref<8x128xf32, #tpu.memory_space<vmem>>, vector<8x128xf32>
    tpu.vector_store %arg2[%c0_1, %c0_2], %0 {strides = array<i32>} : memref<8x128xf32, #tpu.memory_space<vmem>>, vector<8x128xf32>,
    return
  }
  func.func @transform_0(%arg0: i32) -> (i32, i32) {
    %c0_i32 = arith.constant 0 : i32
    %c0_i32_0 = arith.constant 0 : i32
    %c0_i32_1 = arith.constant 0 : i32
    return %c0_i32, %c0_i32_0 : i32, i32
  }
  func.func @transform_1(%arg0: i32) -> (i32, i32) {
    %c0_i32 = arith.constant 0 : i32
    %c0_i32_0 = arith.constant 0 : i32
    return %arg0, %c0_i32 : i32, i32
  }
}

module attributes {stable_mosaic.version = 11 : i64} {
  func.func @kernel(%arg0: i32, %arg1: memref<16x128xf32, #tpu.memory_space<vmem>>, %arg2: memref<128x128xbf16, #tpu.memory_space<vmem>>, %arg3: memref<1x128xf32, #tpu.memory_space<vmem>>, %arg4: memref<128x128xbf16, #tpu.memory_space<vmem>>, %arg5: memref<1x128xf32, #tpu.memory_space<vmem>>, %arg6: memref<16x128xf32, #tpu.memory_space<vmem>>) attributes {dimension_semantics = [#tpu.dimension_semantics<parallel>], iteration_bounds = array<i64: 1>, scalar_prefetch = 0 : i64, scratch_operands = 0 : i64, tpu.core_type = #tpu.core_type<tc>, window_params = [{transform_indices = @transform_0, window_bounds = array<i64: 16, 128>}, {pipeline_mode = #tpu.pipeline_mode<synchronous>, transform_indices = @transform_1, window_bounds = array<i64: 128, 128>}, {pipeline_mode = #tpu.pipeline_mode<synchronous>, transform_indices = @transform_2, window_bounds = array<i64: 1, 128>}, {pipeline_mode = #tpu.pipeline_mode<synchronous>, transform_indices = @transform_3, window_bounds = array<i64: 128, 128>}, {pipeline_mode = #tpu.pipeline_mode<synchronous>, transform_indices = @transform_4, window_bounds = array<i64: 1, 128>}, {transform_indices = @transform_5, window_bounds = array<i64: 16, 128>}]} {
    %c0 = arith.constant 0 : index
    %c0_0 = arith.constant 0 : index
    %0 = vector.load %arg1[%c0, %c0_0] : memref<16x128xf32, #tpu.memory_space<vmem>>, vector<16x128xf32>
    %1 = arith.truncf %0 : vector<16x128xf32> to vector<16x128xbf16>
    %c0_1 = arith.constant 0 : index
    %c0_2 = arith.constant 0 : index
    %2 = vector.load %arg2[%c0_1, %c0_2] : memref<128x128xbf16, #tpu.memory_space<vmem>>, vector<128x128xbf16>
    %cst = arith.constant dense<0.000000e+00> : vector<16x128xf32>
    %3 = tpu.matmul %1, %2, %cst {dimension_numbers = #tpu.dot_dimension_numbers<[1], [0], [0], [1], [0, 0, 1, 1], [], []>} : vector<16x128xbf16>, vector<128x128xbf16>, vector<16x128xf32> -> vector<16x128xf32>
    %c0_3 = arith.constant 0 : index
    %c0_4 = arith.constant 0 : index
    %4 = vector.load %arg3[%c0_3, %c0_4] : memref<1x128xf32, #tpu.memory_space<vmem>>, vector<1x128xf32>
    %5 = vector.broadcast %4 : vector<1x128xf32> to vector<16x128xf32>
    %6 = arith.addf %3, %5 : vector<16x128xf32>
    %7 = arith.truncf %6 : vector<16x128xf32> to vector<16x128xbf16>
    %8 = arith.mulf %7, %7 : vector<16x128xbf16>
    %9 = arith.mulf %7, %8 : vector<16x128xbf16>
    %cst_5 = arith.constant 4.467770e-02 : bf16
    %10 = vector.broadcast %cst_5 : bf16 to vector<16x128xbf16>
    %11 = arith.mulf %10, %9 : vector<16x128xbf16>
    %12 = arith.addf %7, %11 : vector<16x128xbf16>
    %cst_6 = arith.constant 7.968750e-01 : bf16
    %13 = vector.broadcast %cst_6 : bf16 to vector<16x128xbf16>
    %14 = arith.mulf %13, %12 : vector<16x128xbf16>
    %15 = math.tanh %14 : vector<16x128xbf16>
    %cst_7 = arith.constant 1.000000e+00 : bf16
    %16 = vector.broadcast %cst_7 : bf16 to vector<16x128xbf16>
    %17 = arith.addf %16, %15 : vector<16x128xbf16>
    %cst_8 = arith.constant 5.000000e-01 : bf16
    %18 = vector.broadcast %cst_8 : bf16 to vector<16x128xbf16>
    %19 = arith.mulf %18, %17 : vector<16x128xbf16>
    %20 = arith.mulf %7, %19 : vector<16x128xbf16>
    %c0_9 = arith.constant 0 : index
    %c0_10 = arith.constant 0 : index
    %21 = vector.load %arg4[%c0_9, %c0_10] : memref<128x128xbf16, #tpu.memory_space<vmem>>, vector<128x128xbf16>
    %cst_11 = arith.constant dense<0.000000e+00> : vector<16x128xf32>
    %22 = tpu.matmul %20, %21, %cst_11 {dimension_numbers = #tpu.dot_dimension_numbers<[1], [0], [0], [1], [0, 0, 1, 1], [], []>} : vector<16x128xbf16>, vector<128x128xbf16>, vector<16x128xf32> -> vector<16x128xf32>
    %c0_12 = arith.constant 0 : index
    %c0_13 = arith.constant 0 : index
    %23 = vector.load %arg5[%c0_12, %c0_13] : memref<1x128xf32, #tpu.memory_space<vmem>>, vector<1x128xf32>
    %24 = vector.broadcast %23 : vector<1x128xf32> to vector<16x128xf32>
    %25 = arith.addf %22, %24 : vector<16x128xf32>
    %26 = arith.addf %25, %0 : vector<16x128xf32>
    %c0_14 = arith.constant 0 : index
    %c0_15 = arith.constant 0 : index
    %27 = vector.load %arg6[%c0_14, %c0_15] : memref<16x128xf32, #tpu.memory_space<vmem>>, vector<16x128xf32>
    tpu.vector_store %arg6[%c0_14, %c0_15], %26 {strides = array<i32>} : memref<16x128xf32, #tpu.memory_space<vmem>>, vector<16x128xf32>,
    return
  }
  func.func @transform_0(%arg0: i32) -> (i32, i32) {
    %c0_i32 = arith.constant 0 : i32
    %c0_i32_0 = arith.constant 0 : i32
    return %arg0, %c0_i32 : i32, i32
  }
  func.func @transform_1(%arg0: i32) -> (i32, i32) {
    %c0_i32 = arith.constant 0 : i32
    %c0_i32_0 = arith.constant 0 : i32
    %c0_i32_1 = arith.constant 0 : i32
    return %c0_i32, %c0_i32_0 : i32, i32
  }
  func.func @transform_2(%arg0: i32) -> (i32, i32) {
    %c0_i32 = arith.constant 0 : i32
    %c0_i32_0 = arith.constant 0 : i32
    %c0_i32_1 = arith.constant 0 : i32
    return %c0_i32, %c0_i32_0 : i32, i32
  }
  func.func @transform_3(%arg0: i32) -> (i32, i32) {
    %c0_i32 = arith.constant 0 : i32
    %c0_i32_0 = arith.constant 0 : i32
    %c0_i32_1 = arith.constant 0 : i32
    return %c0_i32, %c0_i32_0 : i32, i32
  }
  func.func @transform_4(%arg0: i32) -> (i32, i32) {
    %c0_i32 = arith.constant 0 : i32
    %c0_i32_0 = arith.constant 0 : i32
    %c0_i32_1 = arith.constant 0 : i32
    return %c0_i32, %c0_i32_0 : i32, i32
  }
  func.func @transform_5(%arg0: i32) -> (i32, i32) {
    %c0_i32 = arith.constant 0 : i32
    %c0_i32_0 = arith.constant 0 : i32
    return %arg0, %c0_i32 : i32, i32
  }
}

</mosaic_0001>

<llo_original>
// kernel: tpu_custom_call.1
$region0: #{tpu_custom_call.1}
  #allocation0 [shape = 'u32[]', space=smem, size = 0x4, offset = 0x4, fixed_abs, tag = 'smem constant byte address 0x4 - core index']
  #allocation1 [shape = 'u32[144,128]{1,0:T(1,128)}', space=vmem, size = 0x12000, scoped, tag = 'internal scratch']
  %s0 = inlined_call_operand.hbm [shape: f32[8,128], index: 0, kind: input, shape index: {}]
  %s1 = inlined_call_operand.hbm [shape: f32[16,128], index: 1, kind: output, shape index: {}]
  %s2 = sld [smem:[#allocation0]]
  $region41: #{tpu_custom_call.1} parent=0
    _
  %s4 = ssub.s32 1, %s2
  %s5 = scalar_select 0, %s4, %s2
  $region1: #{tpu_custom_call.1} parent=0
    #allocation2 [shape = 'u8[4096]{0}', space=vmem, size = 0x1000, scoped, tag = 'input window, operand 0, single buffered']
    #allocation3 [shape = 's32[2]{0}', space=sflag, size = 0x8, scoped, tag = 'scoped memory for tpu_custom_call.1']
    #allocation4 [shape = 's32[2]{0}', space=sflag, size = 0x8, scoped, tag = 'scoped memory for tpu_custom_call.1']
    #allocation5 [shape = 'u8[8192]{0}', space=vmem, size = 0x2000, scoped, tag = 'output window, operand 0']
    %6 = vsyncpa [#allocation3], 0
    %7 = vsyncpa [#allocation4], 0
    %s8 = scalar_lea.sflag [#allocation4], 1
    %9 = vsyncpa %s8, 0
    loop: start=0, step=1, limit=4
    $region2: #{tpu_custom_call.1} parent=1 // loop_pre_header
      _
    $region3: #{tpu_custom_call.1} parent=1 // loop_header
      %s11 = sphi 0, %s15
      %p12 = scmp.ge.s32.totalorder %s11, 4
      %s19 = sphi 0, %s19
      %s21 = sphi 0, %s19
      %s22 = sphi 0, %s21
      %s36 = sphi 0, %s22
      %s42 = sphi 0, %s44
      %s45 = sphi 0, %s42
      %s46 = sphi 0, %s45
      %s62 = sphi 0, %s46
    $region4: #{tpu_custom_call.1} parent=1 // loop_header_branch
      %14 = sbr.rel (%p12) target = $region8
    $region5: #{tpu_custom_call.1} parent=1 // loop_body
      %s16 = ssub.s32 %s11, 1
      %s17 = ssub.s32 %s11, 2
      %s18 = sadd.s32 %s11, 1
      %s20 = sadd.s32 %s19, 1
      %p23 = scmp.eq.s32.totalorder %s11, 1
      %p24 = scmp.ne.s32.totalorder %s19, %s21
      %p25 = scmp.eq.s32.totalorder %s11, 0
      %p26 = por %p24, %p25
      %p27 = scmp.ne.s32.totalorder %s19, %s21
      %p28 = scmp.eq.s32.totalorder %s16, 1
      %p29 = por %p27, %p28
      %p30 = scmp.ne.s32.totalorder %s21, %s22
      %p31 = scmp.eq.s32.totalorder %s16, 0
      %p32 = por %p30, %p31
      %p33 = scmp.ne.s32.totalorder %s21, %s22
      %p34 = scmp.eq.s32.totalorder %s17, 1
      %p35 = por %p33, %p34
      %p37 = scmp.ne.s32.totalorder %s22, %s36
      %p38 = scmp.eq.s32.totalorder %s17, 0
      %p39 = por %p37, %p38
      %s40 = ssub.s32 %s11, %s18
      %p41 = scmp.eq.s32.totalorder %s40, 0
      %s43 = sadd.s32 %s42, 1
      %s44 = scalar_select %p41, %s42, %s43
      %p47 = pneg %p41
      %p48 = scmp.eq.s32.totalorder %s11, 1
      %p49 = por %p47, %p48
      %p50 = scmp.ne.s32.totalorder %s42, %s45
      %p51 = scmp.eq.s32.totalorder %s11, 0
      %p52 = por %p50, %p51
      %p53 = scmp.ne.s32.totalorder %s42, %s45
      %p54 = scmp.eq.s32.totalorder %s16, 1
      %p55 = por %p53, %p54
      %p56 = scmp.ne.s32.totalorder %s45, %s46
      %p57 = scmp.eq.s32.totalorder %s16, 0
      %p58 = por %p56, %p57
      %p59 = scmp.ne.s32.totalorder %s45, %s46
      %p60 = scmp.eq.s32.totalorder %s17, 1
      %p61 = por %p59, %p60
      %p63 = scmp.ne.s32.totalorder %s46, %s62
      %p64 = scmp.eq.s32.totalorder %s17, 0
      %p65 = por %p63, %p64
      %p66 = scmp.le.s32.totalorder 1, %s11
      %p67 = scmp.lt.s32.totalorder %s11, 3
      %p68 = pnand %p66, %p67
      %p69 = pneg %p68
      // Predicated region
      $region9: #{tpu_custom_call.1} parent=5 // pred_check
        _
      $region10: #{tpu_custom_call.1} parent=5 // pred_check_branch
        %71 = sbr.rel (%p68) target = $region12
      $region11: #{tpu_custom_call.1} parent=5 // pred_region
        %s72 = ssub.s32 %s11, 1
        // Predicated region
        $region13: #{tpu_custom_call.1} parent=11 // pred_check
          %p73 = pneg %p32
        $region14: #{tpu_custom_call.1} parent=11 // pred_check_branch
          %75 = sbr.rel (%p73) target = $region16
        $region15: #{tpu_custom_call.1} parent=11 // pred_region
          %s77 = ssub.s32 128, 128
          %78 = vsyncadd [#allocation3], %s77
          %s80 = sshll.u32 [#allocation2], 4
          %s81 = int_to_ptr.vmem [resolvable:$true] %s80
          %83 = dma.hbm_to_vmem [thread:$0]  %s0, 128, %s81, [#allocation3]
        $region16: #{tpu_custom_call.1} parent=11 // pred_fallthru
          _
      $region12: #{tpu_custom_call.1} parent=5 // pred_fallthru
        _
      %p84 = scmp.lt.s32.totalorder %s11, 2
      // Predicated region
      $region17: #{tpu_custom_call.1} parent=5 // pred_check
        %p85 = pneg %p84
      $region18: #{tpu_custom_call.1} parent=5 // pred_check_branch
        %87 = sbr.rel (%p85) target = $region20
      $region19: #{tpu_custom_call.1} parent=5 // pred_region
        _
      $region20: #{tpu_custom_call.1} parent=5 // pred_fallthru
        _
      %p88 = scmp.le.s32.totalorder 1, %s11
      %p89 = scmp.lt.s32.totalorder %s11, 3
      %p90 = pnand %p88, %p89
      %p91 = pneg %p90
      // Predicated region
      $region21: #{tpu_custom_call.1} parent=5 // pred_check
        _
      $region22: #{tpu_custom_call.1} parent=5 // pred_check_branch
        %93 = sbr.rel (%p90) target = $region24
      $region23: #{tpu_custom_call.1} parent=5 // pred_region
        %s94 = ssub.s32 %s11, 1
        // Predicated region
        $region25: #{tpu_custom_call.1} parent=23 // pred_check
          %p95 = pneg %p32
        $region26: #{tpu_custom_call.1} parent=23 // pred_check_branch
          %97 = sbr.rel (%p95) target = $region28
        $region27: #{tpu_custom_call.1} parent=23 // pred_region
          %98 = dma.done [#allocation3], 128
        $region28: #{tpu_custom_call.1} parent=23 // pred_fallthru
          _
        %p99 = pneg %p32
        %p100 = pneg %p29
        %p101 = pneg %p58
        %p102 = pneg %p55
        %s103 = sand.u32 %s45, 1
        %s104 = scalar_lea.sflag [#allocation4], %s103
        %s105 = sand.u32 %s45, 1
        %s106 = smul.addr %s105, 8
        %s107 = scalar_lea.vmem [#allocation5], %s106
        %v108 = vld [vmem:[#allocation2] sm:$0xff]
        %109 = vst [vmem:[%s107] sm:$0xff] %v108
        %s110 = sand.u32 %s45, 1
        %s111 = scalar_lea.sflag [#allocation4], %s110
        %s112 = sand.u32 %s45, 1
        %s113 = smul.addr %s112, 8
        %s114 = scalar_lea.vmem [#allocation5], %s113
        // Predicated region
        $region29: #{tpu_custom_call.1} parent=23 // pred_check
          %p115 = pneg %p55
        $region30: #{tpu_custom_call.1} parent=23 // pred_check_branch
          %117 = sbr.rel (%p115) target = $region32
        $region31: #{tpu_custom_call.1} parent=23 // pred_region
          %s119 = ssub.s32 128, 128
          %120 = vsyncadd %s111, %s119
          %s121 = smul.addr %s16, 128
          %s122 = scalar_lea.hbm %s1, %s121
          %s124 = sshll.u32 %s114, 4
          %s125 = int_to_ptr.vmem [resolvable:$true] %s124
          %127 = dma.vmem_to_hbm [thread:$0]  %s125, 128, %s122, %s111
        $region32: #{tpu_custom_call.1} parent=23 // pred_fallthru
          _
      $region24: #{tpu_custom_call.1} parent=5 // pred_fallthru
        _
      %p128 = scmp.le.s32.totalorder 2, %s11
      // Predicated region
      $region33: #{tpu_custom_call.1} parent=5 // pred_check
        %p129 = pneg %p128
      $region34: #{tpu_custom_call.1} parent=5 // pred_check_branch
        %131 = sbr.rel (%p129) target = $region36
      $region35: #{tpu_custom_call.1} parent=5 // pred_region
        %s132 = ssub.s32 %s11, 2
        // Predicated region
        $region37: #{tpu_custom_call.1} parent=35 // pred_check
          %p133 = pneg %p61
        $region38: #{tpu_custom_call.1} parent=35 // pred_check_branch
          %135 = sbr.rel (%p133) target = $region40
        $region39: #{tpu_custom_call.1} parent=35 // pred_region
          %s136 = sand.u32 %s46, 1
          %s137 = scalar_lea.sflag [#allocation4], %s136
          %s138 = sand.u32 %s46, 1
          %s139 = smul.addr %s138, 8
          %s140 = scalar_lea.vmem [#allocation5], %s139
          %141 = dma.done %s137, 128
        $region40: #{tpu_custom_call.1} parent=35 // pred_fallthru
          _
      $region36: #{tpu_custom_call.1} parent=5 // pred_fallthru
        _
    $region6: #{tpu_custom_call.1} parent=1 // loop_footer
      %s15 = sadd.s32 1, %s11
    $region7: #{tpu_custom_call.1} parent=1 // loop_footer_branch
      %10 = sbr.rel target = $region3
    $region8: #{tpu_custom_call.1} parent=1 // loop_exit
      _
    %142 = vsyncpa [#allocation3], 1
    %s143 = scalar_lea.sflag [#allocation3], 1
    %144 = vsyncpa %s143, 1
    %145 = vsyncpa [#allocation4], 1
    %s146 = scalar_lea.sflag [#allocation4], 1
    %147 = vsyncpa %s146, 1

// kernel: tpu_custom_call.1
$region0: #{tpu_custom_call.1}
  #allocation0 [shape = 'u32[]', space=smem, size = 0x4, offset = 0x4, fixed_abs, tag = 'smem constant byte address 0x4 - core index']
  #allocation1 [shape = 'u32[144,128]{1,0:T(1,128)}', space=vmem, size = 0x12000, scoped, tag = 'internal scratch']
  %s0 = inlined_call_operand.hbm [shape: f32[8,128], index: 0, kind: input, shape index: {}]
  %s1 = inlined_call_operand.hbm [shape: bf16[128,128], index: 1, kind: input, shape index: {}]
  %s2 = inlined_call_operand.vmem [shape: f32[1,128], index: 2, kind: input, shape index: {}]
  %s3 = inlined_call_operand.hbm [shape: bf16[128,128], index: 3, kind: input, shape index: {}]
  %s4 = inlined_call_operand.vmem [shape: f32[1,128], index: 4, kind: input, shape index: {}]
  %s5 = inlined_call_operand.hbm [shape: f32[8,128], index: 5, kind: output, shape index: {}]
  %s6 = sld [smem:[#allocation0]]
  $region42: #{tpu_custom_call.1} parent=0
    _
  %s8 = ssub.s32 1, %s6
  %s9 = scalar_select 0, %s8, %s6
  $region1: #{tpu_custom_call.1} parent=0
    #allocation2 [shape = 'u8[8192]{0}', space=vmem, size = 0x2000, scoped, tag = 'input window, operand 0, single buffered']
    #allocation3 [shape = 's32[1]{0}', space=sflag, size = 0x4, scoped, tag = 'scoped memory for tpu_custom_call.1']
    #allocation4 [shape = 's32[1]{0}', space=sflag, size = 0x4, scoped, tag = 'scoped memory for tpu_custom_call.1']
    #allocation5 [shape = 'u8[32768]{0}', space=vmem, size = 0x8000, scoped, tag = 'input window, operand 1, single buffered']
    #allocation6 [shape = 's32[1]{0}', space=sflag, size = 0x4, scoped, tag = 'scoped memory for tpu_custom_call.1']
    #allocation7 [shape = 'u8[32768]{0}', space=vmem, size = 0x8000, scoped, tag = 'input window, operand 3, single buffered']
    #allocation8 [shape = 'u8[8192]{0}', space=vmem, size = 0x2000, scoped, tag = 'output window, operand 0, single buffered']
    %10 = vsyncpa [#allocation3], 0
    %11 = vsyncpa [#allocation6], 0
    %12 = vsyncpa [#allocation4], 0
    // Predicated region
    $region2: #{tpu_custom_call.1} parent=1 // pred_check
      _
    $region3: #{tpu_custom_call.1} parent=1 // pred_check_branch
      %14 = sbr.rel (0) target = $region5
    $region4: #{tpu_custom_call.1} parent=1 // pred_region
      %s16 = ssub.s32 256, 128
      %17 = vsyncadd [#allocation3], %s16
      %s18 = sshll.u32 [#allocation2], 4
      %s19 = int_to_ptr.vmem [resolvable:$true] %s18
      %24 = dma.hbm_to_vmem [thread:$0]  %s0, 128, %s19, [#allocation3], 128, 128, 8
    $region5: #{tpu_custom_call.1} parent=1 // pred_fallthru
      _
    // Predicated region
    $region6: #{tpu_custom_call.1} parent=1 // pred_check
      _
    $region7: #{tpu_custom_call.1} parent=1 // pred_check_branch
      %26 = sbr.rel (0) target = $region9
    $region8: #{tpu_custom_call.1} parent=1 // pred_region
      %s28 = ssub.s32 1024, 1024
      %29 = vsyncadd [#allocation6], %s28
      %s30 = sshll.u32 [#allocation5], 4
      %s31 = int_to_ptr.vmem [resolvable:$true] %s30
      %36 = dma.hbm_to_vmem [thread:$0]  %s1, 1024, %s31, [#allocation6], 64, 64, 4
    $region9: #{tpu_custom_call.1} parent=1 // pred_fallthru
      _
    // Predicated region
    $region10: #{tpu_custom_call.1} parent=1 // pred_check
      _
    $region11: #{tpu_custom_call.1} parent=1 // pred_check_branch
      %38 = sbr.rel (0) target = $region13
    $region12: #{tpu_custom_call.1} parent=1 // pred_region
      _
    $region13: #{tpu_custom_call.1} parent=1 // pred_fallthru
      _
    // Predicated region
    $region14: #{tpu_custom_call.1} parent=1 // pred_check
      _
    $region15: #{tpu_custom_call.1} parent=1 // pred_check_branch
      %40 = sbr.rel (0) target = $region17
    $region16: #{tpu_custom_call.1} parent=1 // pred_region
      %s42 = ssub.s32 1024, 1024
      %43 = vsyncadd [#allocation6], %s42
      %s44 = sshll.u32 [#allocation7], 4
      %s45 = int_to_ptr.vmem [resolvable:$true] %s44
      %50 = dma.hbm_to_vmem [thread:$0]  %s3, 1024, %s45, [#allocation6], 64, 64, 4
    $region17: #{tpu_custom_call.1} parent=1 // pred_fallthru
      _
    // Predicated region
    $region18: #{tpu_custom_call.1} parent=1 // pred_check
      _
    $region19: #{tpu_custom_call.1} parent=1 // pred_check_branch
      %52 = sbr.rel (0) target = $region21
    $region20: #{tpu_custom_call.1} parent=1 // pred_region
      _
    $region21: #{tpu_custom_call.1} parent=1 // pred_fallthru
      _
    // Predicated region
    $region22: #{tpu_custom_call.1} parent=1 // pred_check
      _
    $region23: #{tpu_custom_call.1} parent=1 // pred_check_branch
      %54 = sbr.rel (0) target = $region25
    $region24: #{tpu_custom_call.1} parent=1 // pred_region
      %55 = dma.done [#allocation3], 256
    $region25: #{tpu_custom_call.1} parent=1 // pred_fallthru
      _
    // Predicated region
    $region26: #{tpu_custom_call.1} parent=1 // pred_check
      _
    $region27: #{tpu_custom_call.1} parent=1 // pred_check_branch
      %57 = sbr.rel (0) target = $region29
    $region28: #{tpu_custom_call.1} parent=1 // pred_region
      %58 = dma.done [#allocation6], 1024
    $region29: #{tpu_custom_call.1} parent=1 // pred_fallthru
      _
    // Predicated region
    $region30: #{tpu_custom_call.1} parent=1 // pred_check
      _
    $region31: #{tpu_custom_call.1} parent=1 // pred_check_branch
      %60 = sbr.rel (0) target = $region33
    $region32: #{tpu_custom_call.1} parent=1 // pred_region
      %61 = dma.done [#allocation6], 1024
    $region33: #{tpu_custom_call.1} parent=1 // pred_fallthru
      _
    %v67 = vld [vmem:[#allocation2] sm:$0xff]
    %v68 = vld [vmem:[#allocation2 + $0x8] sm:$0xff]
    %v69 = vpack.c.bf16 %v68, %v67
    %v70 = vld [vmem:[#allocation5] sm:$0xf]
    %v71 = vld [vmem:[#allocation5 + $0x4] sm:$0xf]
    %v72 = vld [vmem:[#allocation5 + $0x8] sm:$0xf]
    %v73 = vld [vmem:[#allocation5 + $0xc] sm:$0xf]
    %v74 = vld [vmem:[#allocation5 + $0x10] sm:$0xf]
    %v75 = vld [vmem:[#allocation5 + $0x14] sm:$0xf]
    %v76 = vld [vmem:[#allocation5 + $0x18] sm:$0xf]
    %v77 = vld [vmem:[#allocation5 + $0x1c] sm:$0xf]
    %v78 = vld [vmem:[#allocation5 + $0x20] sm:$0xf]
    %v79 = vld [vmem:[#allocation5 + $0x24] sm:$0xf]
    %v80 = vld [vmem:[#allocation5 + $0x28] sm:$0xf]
    %v81 = vld [vmem:[#allocation5 + $0x2c] sm:$0xf]
    %v82 = vld [vmem:[#allocation5 + $0x30] sm:$0xf]
    %v83 = vld [vmem:[#allocation5 + $0x34] sm:$0xf]
    %v84 = vld [vmem:[#allocation5 + $0x38] sm:$0xf]
    %v85 = vld [vmem:[#allocation5 + $0x3c] sm:$0xf]
    %v86 = vld [vmem:[%s2] sm:$0x1]
    %v88 = vlaneseq
    %v89 = vshrl.u32 %v88, 7
    %v90 = vsub.s32 0, %v89
    %v91 = vrot.slane %v86, %v90
    %v109 = vunpack.c.l.b16 %v70
    %v110 = vunpack.c.l.b16 %v71
    %v111 = vunpack.c.l.b16 %v72
    %v112 = vunpack.c.l.b16 %v73
    %v113 = vunpack.c.l.b16 %v74
    %v114 = vunpack.c.l.b16 %v75
    %v115 = vunpack.c.l.b16 %v76
    %v116 = vunpack.c.l.b16 %v77
    %v117 = vunpack.c.l.b16 %v78
    %v118 = vunpack.c.l.b16 %v79
    %v119 = vunpack.c.l.b16 %v80
    %v120 = vunpack.c.l.b16 %v81
    %v121 = vunpack.c.l.b16 %v82
    %v122 = vunpack.c.l.b16 %v83
    %v123 = vunpack.c.l.b16 %v84
    %v124 = vunpack.c.l.b16 %v85
    %v125 = vpack.c.b16 %v110, %v109
    %v126 = vpack.c.b16 %v112, %v111
    %v127 = vpack.c.b16 %v114, %v113
    %v128 = vpack.c.b16 %v116, %v115
    %v129 = vpack.c.b16 %v118, %v117
    %v130 = vpack.c.b16 %v120, %v119
    %v131 = vpack.c.b16 %v122, %v121
    %v132 = vpack.c.b16 %v124, %v123
    %141 = vmatprep.subr.bf16.mxu0 0
    %142 = vmatpush1.bf16.msra.mxu0 %v125
    %143 = vmatprep.subr.bf16.mxu0 0
    %144 = vmatpush1.bf16.msra.mxu0 %v126
    %145 = vmatprep.subr.bf16.mxu0 0
    %146 = vmatpush1.bf16.msra.mxu0 %v127
    %147 = vmatprep.subr.bf16.mxu0 0
    %148 = vmatpush1.bf16.msra.mxu0 %v128
    %149 = vmatprep.subr.bf16.mxu0 0
    %150 = vmatpush1.bf16.msra.mxu0 %v129
    %151 = vmatprep.subr.bf16.mxu0 0
    %152 = vmatpush1.bf16.msra.mxu0 %v130
    %153 = vmatprep.subr.bf16.mxu0 0
    %154 = vmatpush1.bf16.msra.mxu0 %v131
    %155 = vmatprep.subr.bf16.mxu0 0
    %156 = vmatpush1.bf16.msra.mxu0 %v132
    %157 = vmatprep.subr.bf16.mxu0 0
    %158 = vmatpush1.bf16.msra.mxu0 0
    %159 = vmatprep.subr.bf16.mxu0 0
    %160 = vmatpush1.bf16.msra.mxu0 0
    %161 = vmatprep.subr.bf16.mxu0 0
    %162 = vmatpush1.bf16.msra.mxu0 0
    %163 = vmatprep.subr.bf16.mxu0 0
    %164 = vmatpush1.bf16.msra.mxu0 0
    %165 = vmatprep.subr.bf16.mxu0 0
    %166 = vmatpush1.bf16.msra.mxu0 0
    %167 = vmatprep.subr.bf16.mxu0 0
    %168 = vmatpush1.bf16.msra.mxu0 0
    %169 = vmatprep.subr.bf16.mxu0 0
    %170 = vmatpush1.bf16.msra.mxu0 0
    %171 = vmatprep.subr.bf16.mxu0 0
    %172 = vmatpush1.bf16.msra.mxu0 0
    %173 = vmatprep.mubr.bf16.mxu0 0
    %174 = vmatmul.mubr.bf16.gmra.mrb[0].mxu0 %v69
    %v175 = vpop.f32.mrb[0].mxu0
    %v176 = vadd.f32 %v91, %v175
    %v177 = vpop.f32.mrb[0].mxu0
    %v178 = vpop.f32.mrb[0].mxu0
    %v179 = vadd.f32 %v91, %v178
    %v180 = vpop.f32.mrb[0].mxu0
    %181 = vdwg.mxu0
    %v182 = vpack.c.bf16 %v179, %v176
    %v183 = vmul.bf16 %v182, %v182
    %v184 = vmul.bf16 %v182, %v183
    %v185 = vmul.bf16 %v184, 1027030327
    %v186 = vadd.bf16 %v182, %v185
    %v187 = vmul.bf16 %v186, 1061961548
    %v188 = vtanh.bf16.pop %v187
    %v189 = vadd.bf16 %v188, 1065369472
    %v190 = vmul.bf16 %v189, 1056980736
    %v191 = vmul.bf16 %v182, %v190
    %v192 = vld [vmem:[#allocation7] sm:$0xf]
    %v193 = vld [vmem:[#allocation7 + $0x4] sm:$0xf]
    %v194 = vld [vmem:[#allocation7 + $0x8] sm:$0xf]
    %v195 = vld [vmem:[#allocation7 + $0xc] sm:$0xf]
    %v196 = vld [vmem:[#allocation7 + $0x10] sm:$0xf]
    %v197 = vld [vmem:[#allocation7 + $0x14] sm:$0xf]
    %v198 = vld [vmem:[#allocation7 + $0x18] sm:$0xf]
    %v199 = vld [vmem:[#allocation7 + $0x1c] sm:$0xf]
    %v200 = vld [vmem:[#allocation7 + $0x20] sm:$0xf]
    %v201 = vld [vmem:[#allocation7 + $0x24] sm:$0xf]
    %v202 = vld [vmem:[#allocation7 + $0x28] sm:$0xf]
    %v203 = vld [vmem:[#allocation7 + $0x2c] sm:$0xf]
    %v204 = vld [vmem:[#allocation7 + $0x30] sm:$0xf]
    %v205 = vld [vmem:[#allocation7 + $0x34] sm:$0xf]
    %v206 = vld [vmem:[#allocation7 + $0x38] sm:$0xf]
    %v207 = vld [vmem:[#allocation7 + $0x3c] sm:$0xf]
    %v208 = vld [vmem:[%s4] sm:$0x1]
    %v210 = vlaneseq
    %v211 = vshrl.u32 %v210, 7
    %v212 = vsub.s32 0, %v211
    %v213 = vrot.slane %v208, %v212
    %v231 = vunpack.c.l.b16 %v192
    %v232 = vunpack.c.l.b16 %v193
    %v233 = vunpack.c.l.b16 %v194
    %v234 = vunpack.c.l.b16 %v195
    %v235 = vunpack.c.l.b16 %v196
    %v236 = vunpack.c.l.b16 %v197
    %v237 = vunpack.c.l.b16 %v198
    %v238 = vunpack.c.l.b16 %v199
    %v239 = vunpack.c.l.b16 %v200
    %v240 = vunpack.c.l.b16 %v201
    %v241 = vunpack.c.l.b16 %v202
    %v242 = vunpack.c.l.b16 %v203
    %v243 = vunpack.c.l.b16 %v204
    %v244 = vunpack.c.l.b16 %v205
    %v245 = vunpack.c.l.b16 %v206
    %v246 = vunpack.c.l.b16 %v207
    %v247 = vpack.c.b16 %v232, %v231
    %v248 = vpack.c.b16 %v234, %v233
    %v249 = vpack.c.b16 %v236, %v235
    %v250 = vpack.c.b16 %v238, %v237
    %v251 = vpack.c.b16 %v240, %v239
    %v252 = vpack.c.b16 %v242, %v241
    %v253 = vpack.c.b16 %v244, %v243
    %v254 = vpack.c.b16 %v246, %v245
    %263 = vmatprep.subr.bf16.mxu0 0
    %264 = vmatpush1.bf16.msra.mxu0 %v247
    %265 = vmatprep.subr.bf16.mxu0 0
    %266 = vmatpush1.bf16.msra.mxu0 %v248
    %267 = vmatprep.subr.bf16.mxu0 0
    %268 = vmatpush1.bf16.msra.mxu0 %v249
    %269 = vmatprep.subr.bf16.mxu0 0
    %270 = vmatpush1.bf16.msra.mxu0 %v250
    %271 = vmatprep.subr.bf16.mxu0 0
    %272 = vmatpush1.bf16.msra.mxu0 %v251
    %273 = vmatprep.subr.bf16.mxu0 0
    %274 = vmatpush1.bf16.msra.mxu0 %v252
    %275 = vmatprep.subr.bf16.mxu0 0
    %276 = vmatpush1.bf16.msra.mxu0 %v253
    %277 = vmatprep.subr.bf16.mxu0 0
    %278 = vmatpush1.bf16.msra.mxu0 %v254
    %279 = vmatprep.subr.bf16.mxu0 0
    %280 = vmatpush1.bf16.msra.mxu0 0
    %281 = vmatprep.subr.bf16.mxu0 0
    %282 = vmatpush1.bf16.msra.mxu0 0
    %283 = vmatprep.subr.bf16.mxu0 0
    %284 = vmatpush1.bf16.msra.mxu0 0
    %285 = vmatprep.subr.bf16.mxu0 0
    %286 = vmatpush1.bf16.msra.mxu0 0
    %287 = vmatprep.subr.bf16.mxu0 0
    %288 = vmatpush1.bf16.msra.mxu0 0
    %289 = vmatprep.subr.bf16.mxu0 0
    %290 = vmatpush1.bf16.msra.mxu0 0
    %291 = vmatprep.subr.bf16.mxu0 0
    %292 = vmatpush1.bf16.msra.mxu0 0
    %293 = vmatprep.subr.bf16.mxu0 0
    %294 = vmatpush1.bf16.msra.mxu0 0
    %295 = vmatprep.mubr.bf16.mxu0 0
    %296 = vmatmul.mubr.bf16.gmra.mrb[0].mxu0 %v191
    %v297 = vpop.f32.mrb[0].mxu0
    %v298 = vadd.f32 %v213, %v297
    %v299 = vpop.f32.mrb[0].mxu0
    %v300 = vpop.f32.mrb[0].mxu0
    %v301 = vadd.f32 %v213, %v300
    %v302 = vpop.f32.mrb[0].mxu0
    %303 = vdwg.mxu0
    %v304 = vadd.f32 %v298, %v67
    %v305 = vadd.f32 %v301, %v68
    %306 = vst [vmem:[#allocation8] sm:$0xff] %v304
    %307 = vst [vmem:[#allocation8 + $0x8] sm:$0xff] %v305
    // Predicated region
    $region34: #{tpu_custom_call.1} parent=1 // pred_check
      _
    $region35: #{tpu_custom_call.1} parent=1 // pred_check_branch
      %309 = sbr.rel (0) target = $region37
    $region36: #{tpu_custom_call.1} parent=1 // pred_region
      %s311 = ssub.s32 256, 128
      %312 = vsyncadd [#allocation4], %s311
      %s313 = sshll.u32 [#allocation8], 4
      %s314 = int_to_ptr.vmem [resolvable:$true] %s313
      %319 = dma.vmem_to_hbm [thread:$0]  %s314, 128, %s5, [#allocation4], 128, 128, 8
    $region37: #{tpu_custom_call.1} parent=1 // pred_fallthru
      _
    // Predicated region
    $region38: #{tpu_custom_call.1} parent=1 // pred_check
      _
    $region39: #{tpu_custom_call.1} parent=1 // pred_check_branch
      %321 = sbr.rel (0) target = $region41
    $region40: #{tpu_custom_call.1} parent=1 // pred_region
      %322 = dma.done [#allocation4], 256
    $region41: #{tpu_custom_call.1} parent=1 // pred_fallthru
      _
    %323 = vsyncpa [#allocation3], 1
    %324 = vsyncpa [#allocation6], 1
    %325 = vsyncpa [#allocation4], 1

</llo_original>
